<compile_context>
chip_gen: v5e
topology: v5e:2x2
jax: 0.10.0
libtpu: 0.0.40
codegen_flags: <defaults>
</compile_context>

<pallas_src>
import jax
import jax.numpy as jnp
from jax.experimental import pallas as pl
from jax.experimental.pallas import tpu as pltpu

P_FEATURES = 8      # abalone: 8 input features
DIM = 200           # hidden width (logical)
DIM_PAD = 256       # hidden width padded to full lane tiles (lanes 200..207 carry x)
OUT_PAD = 128       # lane-dense MXU output width (only column 0 is meaningful)
TB_MAX = 4096       # max batch tile (VMEM use is still only a few MiB)


def _round_up(n, m):
    return (n + m - 1) // m * m


def _choose_tiling(B):
    """steps-first tile selection: minimizes padding waste and guarantees
    >= 2 grid steps (when B > 8) so both v7x TensorCores get work."""
    steps = max(-(-B // TB_MAX), 1)
    if steps == 1 and B > 8:
        steps = 2
    TB = _round_up(-(-B // steps), 8)
    B_pad = steps * TB
    return TB, B_pad, steps


def _sigmoid(z):
    # Single EUP op per lane (tanh); exact (no approx reciprocal).
    return 0.5 * jnp.tanh(0.5 * z) + 0.5


def _mlp_kernel(x_ref, w1_ref, b1_ref, w2_ref, b2_ref, w3_ref, b3_ref, o_ref):
    x = x_ref[...]                                                   # (TB, 8) bf16

    # Layer 0: Linear(p, dim) + sigmoid.  Columns 200..207 of w1 hold an 8x8
    # identity, so z1 lanes 200..207 == x (the concat is built in-place).
    z1 = jnp.dot(x, w1_ref[...], preferred_element_type=jnp.float32) + b1_ref[...]
    lane = jax.lax.broadcasted_iota(jnp.int32, z1.shape, 1)
    hidden = lane < DIM                                              # sigmoid lanes
    h1 = jnp.where(hidden, _sigmoid(z1), z1).astype(jnp.bfloat16)    # (TB, 256)

    # Layer 1: Linear(dim+p, dim) on cat(h1, x) + sigmoid, as one K=256 dot.
    # Rows 200..207 of w2 carry the x-side weights; cols 200..207 re-inject x.
    z2 = jnp.dot(h1, w2_ref[...], preferred_element_type=jnp.float32) + b2_ref[...]
    h2 = jnp.where(hidden, _sigmoid(z2), z2).astype(jnp.bfloat16)    # (TB, 256)

    # Output layer: Linear(dim+p, 1) on cat(h2, x); MXU computes 128 lanes but
    # only column 0 is real -> store just that column (no padded writeback).
    out = jnp.dot(h2, w3_ref[...], preferred_element_type=jnp.float32) + b3_ref[...]
    o_ref[...] = out[:, :1]                                          # (TB, 1) f32


def prepare_params(params):
    """One-time weight prep: transpose to [in, out], fold the concat-with-x
    into the padded lanes/rows via identity blocks, pad hidden width to 256
    and output width to 128, cast to bf16.  Invariant: all padded rows/cols
    outside the blocks written below are ZERO (keeps junk lanes harmless)."""
    w1, b1 = params["w1"], params["b1"]        # (dim, p), (dim,)
    w2, b2 = params["w2"], params["b2"]        # (dim, dim+p), (dim,)
    w3, b3 = params["w3"], params["b3"]        # (1, dim+p), (1,)

    eye_p = jnp.eye(P_FEATURES, dtype=jnp.float32)

    # Layer 1 weight (8, 256): cols 0..199 = w1.T, cols 200..207 = I (carry x).
    w1t = jnp.zeros((P_FEATURES, DIM_PAD), jnp.float32)
    w1t = w1t.at[:, :DIM].set(w1.T)
    w1t = w1t.at[:, DIM:DIM + P_FEATURES].set(eye_p)

    # Layer 2 weight (256, 256):
    #   rows 0..199   cols 0..199   = w2[:, :200].T   (hidden part of concat)
    #   rows 200..207 cols 0..199   = w2[:, 200:].T   (x part of concat)
    #   rows 200..207 cols 200..207 = I               (re-inject x downstream)
    w2t = jnp.zeros((DIM_PAD, DIM_PAD), jnp.float32)
    w2t = w2t.at[:DIM, :DIM].set(w2[:, :DIM].T)
    w2t = w2t.at[DIM:DIM + P_FEATURES, :DIM].set(w2[:, DIM:].T)
    w2t = w2t.at[DIM:DIM + P_FEATURES, DIM:DIM + P_FEATURES].set(eye_p)

    # Output weight (256, 128): rows 0..207 of column 0 hold w3.T.
    w3t = jnp.zeros((DIM_PAD, OUT_PAD), jnp.float32)
    w3t = w3t.at[:DIM, 0].set(w3[0, :DIM])
    w3t = w3t.at[DIM:DIM + P_FEATURES, 0].set(w3[0, DIM:])

    b1p = jnp.zeros((1, DIM_PAD), jnp.float32).at[0, :DIM].set(b1)
    b2p = jnp.zeros((1, DIM_PAD), jnp.float32).at[0, :DIM].set(b2)
    b3p = jnp.zeros((1, OUT_PAD), jnp.float32).at[0, 0].set(b3[0])

    return (w1t.astype(jnp.bfloat16), b1p,
            w2t.astype(jnp.bfloat16), b2p,
            w3t.astype(jnp.bfloat16), b3p)


@jax.jit
def forward_prepped(x, prepped):
    """x: (B, p) float32.  prepped: output of prepare_params."""
    B = x.shape[0]
    TB, B_pad, steps = _choose_tiling(B)
    xb = jnp.pad(x, ((0, B_pad - B), (0, 0))).astype(jnp.bfloat16)

    w1t, b1p, w2t, b2p, w3t, b3p = prepped

    def resident(arr):
        # Full-array block, same block every grid step -> stays in VMEM.
        return pl.BlockSpec(arr.shape, lambda i: (0, 0))

    out = pl.pallas_call(
        _mlp_kernel,
        out_shape=jax.ShapeDtypeStruct((B_pad, 1), jnp.float32),
        grid=(steps,),
        in_specs=[
            pl.BlockSpec((TB, P_FEATURES), lambda i: (i, 0)),
            resident(w1t), resident(b1p),
            resident(w2t), resident(b2p),
            resident(w3t), resident(b3p),
        ],
        out_specs=pl.BlockSpec((TB, 1), lambda i: (i, 0)),
        compiler_params=pltpu.CompilerParams(
            dimension_semantics=("parallel",)),
    )(xb, w1t, b1p, w2t, b2p, w3t, b3p)

    return out[:B]


def neural_net_forward(x, params):
    """Convenience wrapper (prep + forward). For repeated calls, call
    prepare_params once and reuse forward_prepped."""
    return forward_prepped(x, prepare_params(params))


def init_params(key):
    """Deterministic init mimicking nn.Linear (uniform +/- 1/sqrt(fan_in))."""
    keys = jax.random.split(key, 6)

    def lin(kw, kb, out_f, in_f):
        bound = 1.0 / jnp.sqrt(in_f)
        w = jax.random.uniform(kw, (out_f, in_f), jnp.float32, -bound, bound)
        b = jax.random.uniform(kb, (out_f,), jnp.float32, -bound, bound)
        return w, b

    w1, b1 = lin(keys[0], keys[1], DIM, P_FEATURES)
    w2, b2 = lin(keys[2], keys[3], DIM, DIM + P_FEATURES)
    w3, b3 = lin(keys[4], keys[5], 1, DIM + P_FEATURES)
    return {"w1": w1, "b1": b1, "w2": w2, "b2": b2, "w3": w3, "b3": b3}


def reference_forward(x, params):
    """Pure-JAX f32 reference matching the PyTorch forward exactly."""
    h1 = jax.nn.sigmoid(x @ params["w1"].T + params["b1"])
    c1 = jnp.concatenate([h1, x], axis=1)
    h2 = jax.nn.sigmoid(c1 @ params["w2"].T + params["b2"])
    c2 = jnp.concatenate([h2, x], axis=1)
    return c2 @ params["w3"].T + params["b3"]


if __name__ == "__main__":
    key = jax.random.PRNGKey(0)
    pkey, xkey1, xkey2, xkey3 = jax.random.split(key, 4)
    params = init_params(pkey)
    prepped = prepare_params(params)

    def check(xkey, B):
        x = jax.random.normal(xkey, (B, P_FEATURES), dtype=jnp.float32)
        out = jax.block_until_ready(forward_prepped(x, prepped))
        ref = reference_forward(x, params)
        assert out.shape == (B, 1), f"bad shape {out.shape}"
        err = jnp.max(jnp.abs(out - ref))
        assert jnp.allclose(out, ref, atol=2e-2, rtol=2e-2), \
            f"mismatch at B={B}: max err {err}"

    check(xkey1, 8)     # single-step grid
    check(xkey2, 37)    # non-multiple-of-8 batch, 2-step grid
    check(xkey3, 300)   # larger tile, 2-step grid

    print("KERNEL_OK")
</pallas_src>

<mosaic_0001>
module attributes {stable_mosaic.version = 11 : i64} {
  func.func @_mlp_kernel(%arg0: i32, %arg1: memref<8x8xbf16, #tpu.memory_space<vmem>>, %arg2: memref<8x256xbf16, #tpu.memory_space<vmem>>, %arg3: memref<1x256xf32, #tpu.memory_space<vmem>>, %arg4: memref<256x256xbf16, #tpu.memory_space<vmem>>, %arg5: memref<1x256xf32, #tpu.memory_space<vmem>>, %arg6: memref<256x128xbf16, #tpu.memory_space<vmem>>, %arg7: memref<1x128xf32, #tpu.memory_space<vmem>>, %arg8: memref<8x1xf32, #tpu.memory_space<vmem>>) attributes {dimension_semantics = [#tpu.dimension_semantics<parallel>], iteration_bounds = array<i64: 1>, scalar_prefetch = 0 : i64, scratch_operands = 0 : i64, tpu.core_type = #tpu.core_type<tc>, window_params = [{transform_indices = @transform_0, window_bounds = array<i64: 8, 8>}, {pipeline_mode = #tpu.pipeline_mode<synchronous>, transform_indices = @transform_1, window_bounds = array<i64: 8, 256>}, {pipeline_mode = #tpu.pipeline_mode<synchronous>, transform_indices = @transform_2, window_bounds = array<i64: 1, 256>}, {pipeline_mode = #tpu.pipeline_mode<synchronous>, transform_indices = @transform_3, window_bounds = array<i64: 256, 256>}, {pipeline_mode = #tpu.pipeline_mode<synchronous>, transform_indices = @transform_4, window_bounds = array<i64: 1, 256>}, {pipeline_mode = #tpu.pipeline_mode<synchronous>, transform_indices = @transform_5, window_bounds = array<i64: 256, 128>}, {pipeline_mode = #tpu.pipeline_mode<synchronous>, transform_indices = @transform_6, window_bounds = array<i64: 1, 128>}, {transform_indices = @transform_7, window_bounds = array<i64: 8, 1>}]} {
    %c0 = arith.constant 0 : index
    %c0_0 = arith.constant 0 : index
    %0 = vector.load %arg1[%c0, %c0_0] : memref<8x8xbf16, #tpu.memory_space<vmem>>, vector<8x8xbf16>
    %c0_1 = arith.constant 0 : index
    %c0_2 = arith.constant 0 : index
    %1 = vector.load %arg2[%c0_1, %c0_2] : memref<8x256xbf16, #tpu.memory_space<vmem>>, vector<8x256xbf16>
    %cst = arith.constant dense<0.000000e+00> : vector<8x256xf32>
    %2 = tpu.matmul %0, %1, %cst {dimension_numbers = #tpu.dot_dimension_numbers<[1], [0], [0], [1], [0, 0, 1, 1], [], []>} : vector<8x8xbf16>, vector<8x256xbf16>, vector<8x256xf32> -> vector<8x256xf32>
    %c0_3 = arith.constant 0 : index
    %c0_4 = arith.constant 0 : index
    %3 = vector.load %arg3[%c0_3, %c0_4] : memref<1x256xf32, #tpu.memory_space<vmem>>, vector<1x256xf32>
    %4 = vector.broadcast %3 : vector<1x256xf32> to vector<8x256xf32>
    %5 = arith.addf %2, %4 : vector<8x256xf32>
    %6 = tpu.iota {dimensions = array<i32: 1>} : vector<8x256xi32>
    %c200_i32 = arith.constant 200 : i32
    %7 = vector.broadcast %c200_i32 : i32 to vector<8x256xi32>
    %8 = arith.cmpi slt, %6, %7 : vector<8x256xi32>
    %cst_5 = arith.constant 5.000000e-01 : f32
    %9 = vector.broadcast %cst_5 : f32 to vector<8x256xf32>
    %10 = arith.mulf %9, %5 : vector<8x256xf32>
    %11 = math.tanh %10 : vector<8x256xf32>
    %cst_6 = arith.constant 5.000000e-01 : f32
    %12 = vector.broadcast %cst_6 : f32 to vector<8x256xf32>
    %13 = arith.mulf %12, %11 : vector<8x256xf32>
    %cst_7 = arith.constant 5.000000e-01 : f32
    %14 = vector.broadcast %cst_7 : f32 to vector<8x256xf32>
    %15 = arith.addf %13, %14 : vector<8x256xf32>
    %16 = arith.select %8, %15, %5 : vector<8x256xi1>, vector<8x256xf32>
    %17 = arith.truncf %16 : vector<8x256xf32> to vector<8x256xbf16>
    %c0_8 = arith.constant 0 : index
    %c0_9 = arith.constant 0 : index
    %18 = vector.load %arg4[%c0_8, %c0_9] : memref<256x256xbf16, #tpu.memory_space<vmem>>, vector<256x256xbf16>
    %cst_10 = arith.constant dense<0.000000e+00> : vector<8x256xf32>
    %19 = tpu.matmul %17, %18, %cst_10 {dimension_numbers = #tpu.dot_dimension_numbers<[1], [0], [0], [1], [0, 0, 1, 1], [], []>} : vector<8x256xbf16>, vector<256x256xbf16>, vector<8x256xf32> -> vector<8x256xf32>
    %c0_11 = arith.constant 0 : index
    %c0_12 = arith.constant 0 : index
    %20 = vector.load %arg5[%c0_11, %c0_12] : memref<1x256xf32, #tpu.memory_space<vmem>>, vector<1x256xf32>
    %21 = vector.broadcast %20 : vector<1x256xf32> to vector<8x256xf32>
    %22 = arith.addf %19, %21 : vector<8x256xf32>
    %cst_13 = arith.constant 5.000000e-01 : f32
    %23 = vector.broadcast %cst_13 : f32 to vector<8x256xf32>
    %24 = arith.mulf %23, %22 : vector<8x256xf32>
    %25 = math.tanh %24 : vector<8x256xf32>
    %cst_14 = arith.constant 5.000000e-01 : f32
    %26 = vector.broadcast %cst_14 : f32 to vector<8x256xf32>
    %27 = arith.mulf %26, %25 : vector<8x256xf32>
    %cst_15 = arith.constant 5.000000e-01 : f32
    %28 = vector.broadcast %cst_15 : f32 to vector<8x256xf32>
    %29 = arith.addf %27, %28 : vector<8x256xf32>
    %30 = arith.select %8, %29, %22 : vector<8x256xi1>, vector<8x256xf32>
    %31 = arith.truncf %30 : vector<8x256xf32> to vector<8x256xbf16>
    %c0_16 = arith.constant 0 : index
    %c0_17 = arith.constant 0 : index
    %32 = vector.load %arg6[%c0_16, %c0_17] : memref<256x128xbf16, #tpu.memory_space<vmem>>, vector<256x128xbf16>
    %cst_18 = arith.constant dense<0.000000e+00> : vector<8x128xf32>
    %33 = tpu.matmul %31, %32, %cst_18 {dimension_numbers = #tpu.dot_dimension_numbers<[1], [0], [0], [1], [0, 0, 1, 1], [], []>} : vector<8x256xbf16>, vector<256x128xbf16>, vector<8x128xf32> -> vector<8x128xf32>
    %c0_19 = arith.constant 0 : index
    %c0_20 = arith.constant 0 : index
    %34 = vector.load %arg7[%c0_19, %c0_20] : memref<1x128xf32, #tpu.memory_space<vmem>>, vector<1x128xf32>
    %35 = vector.broadcast %34 : vector<1x128xf32> to vector<8x128xf32>
    %36 = arith.addf %33, %35 : vector<8x128xf32>
    %37 = vector.extract_strided_slice %36 {offsets = [0, 0], sizes = [8, 1], strides = [1, 1]} : vector<8x128xf32> to vector<8x1xf32>
    %c0_21 = arith.constant 0 : index
    %c0_22 = arith.constant 0 : index
    %38 = vector.load %arg8[%c0_21, %c0_22] : memref<8x1xf32, #tpu.memory_space<vmem>>, vector<8x1xf32>
    tpu.vector_store %arg8[%c0_21, %c0_22], %37 {strides = array<i32>} : memref<8x1xf32, #tpu.memory_space<vmem>>, vector<8x1xf32>,
    return
  }
  func.func @transform_0(%arg0: i32) -> (i32, i32) {
    %c0_i32 = arith.constant 0 : i32
    %c0_i32_0 = arith.constant 0 : i32
    return %arg0, %c0_i32 : i32, i32
  }
  func.func @transform_1(%arg0: i32) -> (i32, i32) {
    %c0_i32 = arith.constant 0 : i32
    %c0_i32_0 = arith.constant 0 : i32
    %c0_i32_1 = arith.constant 0 : i32
    return %c0_i32, %c0_i32_0 : i32, i32
  }
  func.func @transform_2(%arg0: i32) -> (i32, i32) {
    %c0_i32 = arith.constant 0 : i32
    %c0_i32_0 = arith.constant 0 : i32
    %c0_i32_1 = arith.constant 0 : i32
    return %c0_i32, %c0_i32_0 : i32, i32
  }
  func.func @transform_3(%arg0: i32) -> (i32, i32) {
    %c0_i32 = arith.constant 0 : i32
    %c0_i32_0 = arith.constant 0 : i32
    %c0_i32_1 = arith.constant 0 : i32
    return %c0_i32, %c0_i32_0 : i32, i32
  }
  func.func @transform_4(%arg0: i32) -> (i32, i32) {
    %c0_i32 = arith.constant 0 : i32
    %c0_i32_0 = arith.constant 0 : i32
    %c0_i32_1 = arith.constant 0 : i32
    return %c0_i32, %c0_i32_0 : i32, i32
  }
  func.func @transform_5(%arg0: i32) -> (i32, i32) {
    %c0_i32 = arith.constant 0 : i32
    %c0_i32_0 = arith.constant 0 : i32
    %c0_i32_1 = arith.constant 0 : i32
    return %c0_i32, %c0_i32_0 : i32, i32
  }
  func.func @transform_6(%arg0: i32) -> (i32, i32) {
    %c0_i32 = arith.constant 0 : i32
    %c0_i32_0 = arith.constant 0 : i32
    %c0_i32_1 = arith.constant 0 : i32
    return %c0_i32, %c0_i32_0 : i32, i32
  }
  func.func @transform_7(%arg0: i32) -> (i32, i32) {
    %c0_i32 = arith.constant 0 : i32
    %c0_i32_0 = arith.constant 0 : i32
    return %arg0, %c0_i32 : i32, i32
  }
}

</mosaic_0001>

<llo_original>
// kernel: forward_prepped.1
$region0: #{forward_prepped.1}
  #allocation0 [shape = 'u32[]', space=smem, size = 0x4, offset = 0x4, fixed_abs, tag = 'smem constant byte address 0x4 - core index']
  #allocation1 [shape = 'u32[72,128]{1,0:T(1,128)}', space=vmem, size = 0x9000, scoped, tag = 'internal scratch']
  %s0 = inlined_call_operand.vmem [shape: bf16[8,8], index: 0, kind: input, shape index: {}]
  %s1 = inlined_call_operand.vmem [shape: bf16[8,256], index: 1, kind: input, shape index: {}]
  %s2 = inlined_call_operand.vmem [shape: f32[1,256], index: 2, kind: input, shape index: {}]
  %s3 = inlined_call_operand.hbm [shape: bf16[256,256], index: 3, kind: input, shape index: {}]
  %s4 = inlined_call_operand.vmem [shape: f32[1,256], index: 4, kind: input, shape index: {}]
  %s5 = inlined_call_operand.hbm [shape: bf16[256,128], index: 5, kind: input, shape index: {}]
  %s6 = inlined_call_operand.vmem [shape: f32[1,128], index: 6, kind: input, shape index: {}]
  %s7 = inlined_call_operand.vmem [shape: f32[8,1], index: 7, kind: output, shape index: {}]
  %s8 = sld [smem:[#allocation0]]
  $region46: #{forward_prepped.1} parent=0
    _
  %s10 = ssub.s32 1, %s8
  %s11 = scalar_select 0, %s10, %s8
  $region1: #{forward_prepped.1} parent=0
    #allocation2 [shape = 'u8[131072]{0}', space=vmem, size = 0x20000, scoped, tag = 'input window, operand 3, single buffered']
    #allocation3 [shape = 's32[1]{0}', space=sflag, size = 0x4, scoped, tag = 'scoped memory for forward_prepped.1']
    #allocation4 [shape = 'u8[65536]{0}', space=vmem, size = 0x10000, scoped, tag = 'input window, operand 5, single buffered']
    #allocation5 [shape = 's32[1]{0}', space=sflag, size = 0x4, scoped, tag = 'scoped memory for forward_prepped.1']
    %12 = vsyncpa [#allocation3], 0
    %13 = vsyncpa [#allocation5], 0
    // Predicated region
    $region2: #{forward_prepped.1} parent=1 // pred_check
      _
    $region3: #{forward_prepped.1} parent=1 // pred_check_branch
      %15 = sbr.rel (0) target = $region5
    $region4: #{forward_prepped.1} parent=1 // pred_region
      _
    $region5: #{forward_prepped.1} parent=1 // pred_fallthru
      _
    // Predicated region
    $region6: #{forward_prepped.1} parent=1 // pred_check
      _
    $region7: #{forward_prepped.1} parent=1 // pred_check_branch
      %17 = sbr.rel (0) target = $region9
    $region8: #{forward_prepped.1} parent=1 // pred_region
      _
    $region9: #{forward_prepped.1} parent=1 // pred_fallthru
      _
    // Predicated region
    $region10: #{forward_prepped.1} parent=1 // pred_check
      _
    $region11: #{forward_prepped.1} parent=1 // pred_check_branch
      %19 = sbr.rel (0) target = $region13
    $region12: #{forward_prepped.1} parent=1 // pred_region
      _
    $region13: #{forward_prepped.1} parent=1 // pred_fallthru
      _
    // Predicated region
    $region14: #{forward_prepped.1} parent=1 // pred_check
      _
    $region15: #{forward_prepped.1} parent=1 // pred_check_branch
      %21 = sbr.rel (0) target = $region17
    $region16: #{forward_prepped.1} parent=1 // pred_region
      %23 = vsyncadd [#allocation3], 0
      %s24 = sshll.u32 %s3, 4
      %s25 = int_to_ptr.hbm [resolvable:$true] %s24
      %s26 = sshll.u32 [#allocation2], 4
      %s27 = int_to_ptr.vmem [resolvable:$true] %s26
      %32 = dma.hbm_to_vmem [thread:$0]  %s25, 4096, %s27, [#allocation3], 128, 128, 8
    $region17: #{forward_prepped.1} parent=1 // pred_fallthru
      _
    // Predicated region
    $region18: #{forward_prepped.1} parent=1 // pred_check
      _
    $region19: #{forward_prepped.1} parent=1 // pred_check_branch
      %34 = sbr.rel (0) target = $region21
    $region20: #{forward_prepped.1} parent=1 // pred_region
      _
    $region21: #{forward_prepped.1} parent=1 // pred_fallthru
      _
    // Predicated region
    $region22: #{forward_prepped.1} parent=1 // pred_check
      _
    $region23: #{forward_prepped.1} parent=1 // pred_check_branch
      %36 = sbr.rel (0) target = $region25
    $region24: #{forward_prepped.1} parent=1 // pred_region
      %38 = vsyncadd [#allocation5], 0
      %s39 = sshll.u32 %s5, 4
      %s40 = int_to_ptr.hbm [resolvable:$true] %s39
      %s41 = sshll.u32 [#allocation4], 4
      %s42 = int_to_ptr.vmem [resolvable:$true] %s41
      %47 = dma.hbm_to_vmem [thread:$0]  %s40, 2048, %s42, [#allocation5], 64, 64, 4
    $region25: #{forward_prepped.1} parent=1 // pred_fallthru
      _
    // Predicated region
    $region26: #{forward_prepped.1} parent=1 // pred_check
      _
    $region27: #{forward_prepped.1} parent=1 // pred_check_branch
      %49 = sbr.rel (0) target = $region29
    $region28: #{forward_prepped.1} parent=1 // pred_region
      _
    $region29: #{forward_prepped.1} parent=1 // pred_fallthru
      _
    // Predicated region
    $region30: #{forward_prepped.1} parent=1 // pred_check
      _
    $region31: #{forward_prepped.1} parent=1 // pred_check_branch
      %51 = sbr.rel (0) target = $region33
    $region32: #{forward_prepped.1} parent=1 // pred_region
      %53 = dma.done [#allocation3], 4096
    $region33: #{forward_prepped.1} parent=1 // pred_fallthru
      _
    // Predicated region
    $region34: #{forward_prepped.1} parent=1 // pred_check
      _
    $region35: #{forward_prepped.1} parent=1 // pred_check_branch
      %55 = sbr.rel (0) target = $region37
    $region36: #{forward_prepped.1} parent=1 // pred_region
      %57 = dma.done [#allocation5], 2048
    $region37: #{forward_prepped.1} parent=1 // pred_fallthru
      _
    %v59 = vld [vmem:[%s0] sm:$0xf]
    %v60 = vld [vmem:[%s1] sm:$0xff]
    %v61 = vld [vmem:[%s2] sm:$0x3]
    %v63 = vperm.slane %v61, 0
    %v64 = vperm.slane %v61, 1
    %v68 = vunpack.c.l.b16 %v60
    %v69 = vunpack.c.h.b16 %v60
    %v70 = vpack.c.b16 %v68, %v68
    %v71 = vpack.c.b16 %v69, %v69
    %vm72 = vcmask 64512
    %v74 = vsel %vm72, %v59, 0
    %vm76 = vcmask 1043456
    %v78 = vsel %vm76, %v70, 0
    %v81 = vsel %vm76, %v71, 0
    %83 = vmatpush.bf16.msra.mxu0 0
    %84 = vmatpush.bf16.msra.mxu0 0
    %85 = vmatpush.bf16.msra.mxu0 0
    %86 = vmatpush.bf16.msra.mxu0 0
    %87 = vmatpush.bf16.msra.mxu0 0
    %88 = vmatpush.bf16.msra.mxu0 0
    %89 = vmatpush.bf16.msra.mxu0 0
    %90 = vmatpush.bf16.msra.mxu0 %v78
    %91 = vmatmul.bf16.gmra.mxu0 %v74
    %v92 = vpop.f32.mrf.mxu0
    %v93 = vadd.f32 %v63, %v92
    %v94 = vpop.f32.mrf.mxu0
    %95 = vdwg.mxu0
    %96 = vmatpush.bf16.msra.mxu0 0
    %97 = vmatpush.bf16.msra.mxu0 0
    %98 = vmatpush.bf16.msra.mxu0 0
    %99 = vmatpush.bf16.msra.mxu0 0
    %100 = vmatpush.bf16.msra.mxu0 0
    %101 = vmatpush.bf16.msra.mxu0 0
    %102 = vmatpush.bf16.msra.mxu0 0
    %103 = vmatpush.bf16.msra.mxu0 %v81
    %104 = vmatmul.bf16.gmra.mxu0 %v74
    %v105 = vpop.f32.mrf.mxu0
    %v106 = vadd.f32 %v64, %v105
    %v107 = vpop.f32.mrf.mxu0
    %108 = vdwg.mxu0
    %v109 = vlaneseq
    %v110 = vand.u32 %v109, 127
    %v111 = vadd.s32 %v110, 128
    %vm112 = vcmp.lt.s32.totalorder %v110, 200
    %vm113 = vcmp.lt.s32.totalorder %v111, 200
    %v114 = vmul.f32 %v93, 0.5
    %v115 = vmul.f32 %v106, 0.5
    %v116 = vtanh.pop %v114
    %v117 = vtanh.pop %v115
    %v118 = vmul.f32 %v116, 0.5
    %v119 = vmul.f32 %v117, 0.5
    %v120 = vadd.f32 %v118, 0.5
    %v121 = vadd.f32 %v119, 0.5
    %v122 = vsel %vm112, %v120, %v93
    %v123 = vsel %vm113, %v121, %v106
    %v124 = vpack.c.bf16 %v122, %v122
    %v125 = vpack.c.bf16 %v123, %v123
    %v126 = vld [vmem:[#allocation2] sm:$0xff]
    %v127 = vld [vmem:[#allocation2 + $0x8] sm:$0xff]
    %v128 = vld [vmem:[#allocation2 + $0x10] sm:$0xff]
    %v129 = vld [vmem:[#allocation2 + $0x18] sm:$0xff]
    %v130 = vld [vmem:[#allocation2 + $0x20] sm:$0xff]
    %v131 = vld [vmem:[#allocation2 + $0x28] sm:$0xff]
    %v132 = vld [vmem:[#allocation2 + $0x30] sm:$0xff]
    %v133 = vld [vmem:[#allocation2 + $0x38] sm:$0xff]
    %v134 = vld [vmem:[#allocation2 + $0x40] sm:$0xff]
    %v135 = vld [vmem:[#allocation2 + $0x48] sm:$0xff]
    %v136 = vld [vmem:[#allocation2 + $0x50] sm:$0xff]
    %v137 = vld [vmem:[#allocation2 + $0x58] sm:$0xff]
    %v138 = vld [vmem:[#allocation2 + $0x60] sm:$0xff]
    %v139 = vld [vmem:[#allocation2 + $0x68] sm:$0xff]
    %v140 = vld [vmem:[#allocation2 + $0x70] sm:$0xff]
    %v141 = vld [vmem:[#allocation2 + $0x78] sm:$0xff]
    %v142 = vld [vmem:[#allocation2 + $0x80] sm:$0xff]
    %v143 = vld [vmem:[#allocation2 + $0x88] sm:$0xff]
    %v144 = vld [vmem:[#allocation2 + $0x90] sm:$0xff]
    %v145 = vld [vmem:[#allocation2 + $0x98] sm:$0xff]
    %v146 = vld [vmem:[#allocation2 + $0xa0] sm:$0xff]
    %v147 = vld [vmem:[#allocation2 + $0xa8] sm:$0xff]
    %v148 = vld [vmem:[#allocation2 + $0xb0] sm:$0xff]
    %v149 = vld [vmem:[#allocation2 + $0xb8] sm:$0xff]
    %v150 = vld [vmem:[#allocation2 + $0xc0] sm:$0xff]
    %v151 = vld [vmem:[#allocation2 + $0xc8] sm:$0xff]
    %v152 = vld [vmem:[#allocation2 + $0xd0] sm:$0xff]
    %v153 = vld [vmem:[#allocation2 + $0xd8] sm:$0xff]
    %v154 = vld [vmem:[#allocation2 + $0xe0] sm:$0xff]
    %v155 = vld [vmem:[#allocation2 + $0xe8] sm:$0xff]
    %v156 = vld [vmem:[#allocation2 + $0xf0] sm:$0xff]
    %v157 = vld [vmem:[#allocation2 + $0xf8] sm:$0xff]
    %v158 = vld [vmem:[%s4] sm:$0x3]
    %v160 = vperm.slane %v158, 0
    %v161 = vperm.slane %v158, 1
    %v196 = vunpack.c.l.b16 %v126
    %v197 = vunpack.c.h.b16 %v126
    %v198 = vunpack.c.l.b16 %v127
    %v199 = vunpack.c.h.b16 %v127
    %v200 = vunpack.c.l.b16 %v128
    %v201 = vunpack.c.h.b16 %v128
    %v202 = vunpack.c.l.b16 %v129
    %v203 = vunpack.c.h.b16 %v129
    %v204 = vunpack.c.l.b16 %v130
    %v205 = vunpack.c.h.b16 %v130
    %v206 = vunpack.c.l.b16 %v131
    %v207 = vunpack.c.h.b16 %v131
    %v208 = vunpack.c.l.b16 %v132
    %v209 = vunpack.c.h.b16 %v132
    %v210 = vunpack.c.l.b16 %v133
    %v211 = vunpack.c.h.b16 %v133
    %v212 = vunpack.c.l.b16 %v134
    %v213 = vunpack.c.h.b16 %v134
    %v214 = vunpack.c.l.b16 %v135
    %v215 = vunpack.c.h.b16 %v135
    %v216 = vunpack.c.l.b16 %v136
    %v217 = vunpack.c.h.b16 %v136
    %v218 = vunpack.c.l.b16 %v137
    %v219 = vunpack.c.h.b16 %v137
    %v220 = vunpack.c.l.b16 %v138
    %v221 = vunpack.c.h.b16 %v138
    %v222 = vunpack.c.l.b16 %v139
    %v223 = vunpack.c.h.b16 %v139
    %v224 = vunpack.c.l.b16 %v140
    %v225 = vunpack.c.h.b16 %v140
    %v226 = vunpack.c.l.b16 %v141
    %v227 = vunpack.c.h.b16 %v141
    %v228 = vunpack.c.l.b16 %v142
    %v229 = vunpack.c.h.b16 %v142
    %v230 = vunpack.c.l.b16 %v143
    %v231 = vunpack.c.h.b16 %v143
    %v232 = vunpack.c.l.b16 %v144
    %v233 = vunpack.c.h.b16 %v144
    %v234 = vunpack.c.l.b16 %v145
    %v235 = vunpack.c.h.b16 %v145
    %v236 = vunpack.c.l.b16 %v146
    %v237 = vunpack.c.h.b16 %v146
    %v238 = vunpack.c.l.b16 %v147
    %v239 = vunpack.c.h.b16 %v147
    %v240 = vunpack.c.l.b16 %v148
    %v241 = vunpack.c.h.b16 %v148
    %v242 = vunpack.c.l.b16 %v149
    %v243 = vunpack.c.h.b16 %v149
    %v244 = vunpack.c.l.b16 %v150
    %v245 = vunpack.c.h.b16 %v150
    %v246 = vunpack.c.l.b16 %v151
    %v247 = vunpack.c.h.b16 %v151
    %v248 = vunpack.c.l.b16 %v152
    %v249 = vunpack.c.h.b16 %v152
    %v250 = vunpack.c.l.b16 %v153
    %v251 = vunpack.c.h.b16 %v153
    %v252 = vunpack.c.l.b16 %v154
    %v253 = vunpack.c.h.b16 %v154
    %v254 = vunpack.c.l.b16 %v155
    %v255 = vunpack.c.h.b16 %v155
    %v256 = vunpack.c.l.b16 %v156
    %v257 = vunpack.c.h.b16 %v156
    %v258 = vunpack.c.l.b16 %v157
    %v259 = vunpack.c.h.b16 %v157
    %v260 = vpack.c.b16 %v198, %v196
    %v261 = vpack.c.b16 %v199, %v197
    %v262 = vpack.c.b16 %v202, %v200
    %v263 = vpack.c.b16 %v203, %v201
    %v264 = vpack.c.b16 %v206, %v204
    %v265 = vpack.c.b16 %v207, %v205
    %v266 = vpack.c.b16 %v210, %v208
    %v267 = vpack.c.b16 %v211, %v209
    %v268 = vpack.c.b16 %v214, %v212
    %v269 = vpack.c.b16 %v215, %v213
    %v270 = vpack.c.b16 %v218, %v216
    %v271 = vpack.c.b16 %v219, %v217
    %v272 = vpack.c.b16 %v222, %v220
    %v273 = vpack.c.b16 %v223, %v221
    %v274 = vpack.c.b16 %v226, %v224
    %v275 = vpack.c.b16 %v227, %v225
    %v276 = vpack.c.b16 %v230, %v228
    %v277 = vpack.c.b16 %v231, %v229
    %v278 = vpack.c.b16 %v234, %v232
    %v279 = vpack.c.b16 %v235, %v233
    %v280 = vpack.c.b16 %v238, %v236
    %v281 = vpack.c.b16 %v239, %v237
    %v282 = vpack.c.b16 %v242, %v240
    %v283 = vpack.c.b16 %v243, %v241
    %v284 = vpack.c.b16 %v246, %v244
    %v285 = vpack.c.b16 %v247, %v245
    %v286 = vpack.c.b16 %v250, %v248
    %v287 = vpack.c.b16 %v251, %v249
    %v288 = vpack.c.b16 %v254, %v252
    %v289 = vpack.c.b16 %v255, %v253
    %v290 = vpack.c.b16 %v258, %v256
    %v291 = vpack.c.b16 %v259, %v257
    %324 = vmatpush.bf16.msra.mxu0 %v274
    %325 = vmatpush.bf16.msra.mxu0 %v272
    %326 = vmatpush.bf16.msra.mxu0 %v270
    %327 = vmatpush.bf16.msra.mxu0 %v268
    %328 = vmatpush.bf16.msra.mxu0 %v266
    %329 = vmatpush.bf16.msra.mxu0 %v264
    %330 = vmatpush.bf16.msra.mxu0 %v262
    %331 = vmatpush.bf16.msra.mxu0 %v260
    %332 = vmatmul.bf16.gmra.mxu0 %v124
    %v333 = vpop.f32.mrf.mxu0
    %v334 = vadd.f32 %v160, %v333
    %v335 = vpop.f32.mrf.mxu0
    %336 = vdwg.mxu0
    %337 = vmatpush.bf16.msra.mxu0 %v290
    %338 = vmatpush.bf16.msra.mxu0 %v288
    %339 = vmatpush.bf16.msra.mxu0 %v286
    %340 = vmatpush.bf16.msra.mxu0 %v284
    %341 = vmatpush.bf16.msra.mxu0 %v282
    %342 = vmatpush.bf16.msra.mxu0 %v280
    %343 = vmatpush.bf16.msra.mxu0 %v278
    %344 = vmatpush.bf16.msra.mxu0 %v276
    %345 = vmatmul.bf16.gmra.mxu0 %v125
    %v346 = vpop.f32.mrf.mxu0
    %v347 = vadd.f32 %v334, %v346
    %v348 = vpop.f32.mrf.mxu0
    %349 = vdwg.mxu0
    %350 = vmatpush.bf16.msra.mxu0 %v275
    %351 = vmatpush.bf16.msra.mxu0 %v273
    %352 = vmatpush.bf16.msra.mxu0 %v271
    %353 = vmatpush.bf16.msra.mxu0 %v269
    %354 = vmatpush.bf16.msra.mxu0 %v267
    %355 = vmatpush.bf16.msra.mxu0 %v265
    %356 = vmatpush.bf16.msra.mxu0 %v263
    %357 = vmatpush.bf16.msra.mxu0 %v261
    %358 = vmatmul.bf16.gmra.mxu0 %v124
    %v359 = vpop.f32.mrf.mxu0
    %v360 = vadd.f32 %v161, %v359
    %v361 = vpop.f32.mrf.mxu0
    %362 = vdwg.mxu0
    %363 = vmatpush.bf16.msra.mxu0 %v291
    %364 = vmatpush.bf16.msra.mxu0 %v289
    %365 = vmatpush.bf16.msra.mxu0 %v287
    %366 = vmatpush.bf16.msra.mxu0 %v285
    %367 = vmatpush.bf16.msra.mxu0 %v283
    %368 = vmatpush.bf16.msra.mxu0 %v281
    %369 = vmatpush.bf16.msra.mxu0 %v279
    %370 = vmatpush.bf16.msra.mxu0 %v277
    %371 = vmatmul.bf16.gmra.mxu0 %v125
    %v372 = vpop.f32.mrf.mxu0
    %v373 = vadd.f32 %v360, %v372
    %v374 = vpop.f32.mrf.mxu0
    %375 = vdwg.mxu0
    %v376 = vmul.f32 %v347, 0.5
    %v377 = vmul.f32 %v373, 0.5
    %v378 = vtanh.pop %v376
    %v379 = vtanh.pop %v377
    %v380 = vmul.f32 %v378, 0.5
    %v381 = vmul.f32 %v379, 0.5
    %v382 = vadd.f32 %v380, 0.5
    %v383 = vadd.f32 %v381, 0.5
    %v384 = vsel %vm112, %v382, %v347
    %v385 = vsel %vm113, %v383, %v373
    %v386 = vpack.c.bf16 %v384, %v384
    %v387 = vpack.c.bf16 %v385, %v385
    %v388 = vld [vmem:[#allocation4] sm:$0xf]
    %v389 = vld [vmem:[#allocation4 + $0x4] sm:$0xf]
    %v390 = vld [vmem:[#allocation4 + $0x8] sm:$0xf]
    %v391 = vld [vmem:[#allocation4 + $0xc] sm:$0xf]
    %v392 = vld [vmem:[#allocation4 + $0x10] sm:$0xf]
    %v393 = vld [vmem:[#allocation4 + $0x14] sm:$0xf]
    %v394 = vld [vmem:[#allocation4 + $0x18] sm:$0xf]
    %v395 = vld [vmem:[#allocation4 + $0x1c] sm:$0xf]
    %v396 = vld [vmem:[#allocation4 + $0x20] sm:$0xf]
    %v397 = vld [vmem:[#allocation4 + $0x24] sm:$0xf]
    %v398 = vld [vmem:[#allocation4 + $0x28] sm:$0xf]
    %v399 = vld [vmem:[#allocation4 + $0x2c] sm:$0xf]
    %v400 = vld [vmem:[#allocation4 + $0x30] sm:$0xf]
    %v401 = vld [vmem:[#allocation4 + $0x34] sm:$0xf]
    %v402 = vld [vmem:[#allocation4 + $0x38] sm:$0xf]
    %v403 = vld [vmem:[#allocation4 + $0x3c] sm:$0xf]
    %v404 = vld [vmem:[#allocation4 + $0x40] sm:$0xf]
    %v405 = vld [vmem:[#allocation4 + $0x44] sm:$0xf]
    %v406 = vld [vmem:[#allocation4 + $0x48] sm:$0xf]
    %v407 = vld [vmem:[#allocation4 + $0x4c] sm:$0xf]
    %v408 = vld [vmem:[#allocation4 + $0x50] sm:$0xf]
    %v409 = vld [vmem:[#allocation4 + $0x54] sm:$0xf]
    %v410 = vld [vmem:[#allocation4 + $0x58] sm:$0xf]
    %v411 = vld [vmem:[#allocation4 + $0x5c] sm:$0xf]
    %v412 = vld [vmem:[#allocation4 + $0x60] sm:$0xf]
    %v413 = vld [vmem:[#allocation4 + $0x64] sm:$0xf]
    %v414 = vld [vmem:[#allocation4 + $0x68] sm:$0xf]
    %v415 = vld [vmem:[#allocation4 + $0x6c] sm:$0xf]
    %v416 = vld [vmem:[#allocation4 + $0x70] sm:$0xf]
    %v417 = vld [vmem:[#allocation4 + $0x74] sm:$0xf]
    %v418 = vld [vmem:[#allocation4 + $0x78] sm:$0xf]
    %v419 = vld [vmem:[#allocation4 + $0x7c] sm:$0xf]
    %v420 = vld [vmem:[%s6] sm:$0x1]
    %v422 = vperm.slane %v420, 0
    %v456 = vunpack.c.l.b16 %v388
    %v457 = vunpack.c.l.b16 %v389
    %v458 = vunpack.c.l.b16 %v390
    %v459 = vunpack.c.l.b16 %v391
    %v460 = vunpack.c.l.b16 %v392
    %v461 = vunpack.c.l.b16 %v393
    %v462 = vunpack.c.l.b16 %v394
    %v463 = vunpack.c.l.b16 %v395
    %v464 = vunpack.c.l.b16 %v396
    %v465 = vunpack.c.l.b16 %v397
    %v466 = vunpack.c.l.b16 %v398
    %v467 = vunpack.c.l.b16 %v399
    %v468 = vunpack.c.l.b16 %v400
    %v469 = vunpack.c.l.b16 %v401
    %v470 = vunpack.c.l.b16 %v402
    %v471 = vunpack.c.l.b16 %v403
    %v472 = vunpack.c.l.b16 %v404
    %v473 = vunpack.c.l.b16 %v405
    %v474 = vunpack.c.l.b16 %v406
    %v475 = vunpack.c.l.b16 %v407
    %v476 = vunpack.c.l.b16 %v408
    %v477 = vunpack.c.l.b16 %v409
    %v478 = vunpack.c.l.b16 %v410
    %v479 = vunpack.c.l.b16 %v411
    %v480 = vunpack.c.l.b16 %v412
    %v481 = vunpack.c.l.b16 %v413
    %v482 = vunpack.c.l.b16 %v414
    %v483 = vunpack.c.l.b16 %v415
    %v484 = vunpack.c.l.b16 %v416
    %v485 = vunpack.c.l.b16 %v417
    %v486 = vunpack.c.l.b16 %v418
    %v487 = vunpack.c.l.b16 %v419
    %v488 = vpack.c.b16 %v457, %v456
    %v489 = vpack.c.b16 %v459, %v458
    %v490 = vpack.c.b16 %v461, %v460
    %v491 = vpack.c.b16 %v463, %v462
    %v492 = vpack.c.b16 %v465, %v464
    %v493 = vpack.c.b16 %v467, %v466
    %v494 = vpack.c.b16 %v469, %v468
    %v495 = vpack.c.b16 %v471, %v470
    %v496 = vpack.c.b16 %v473, %v472
    %v497 = vpack.c.b16 %v475, %v474
    %v498 = vpack.c.b16 %v477, %v476
    %v499 = vpack.c.b16 %v479, %v478
    %v500 = vpack.c.b16 %v481, %v480
    %v501 = vpack.c.b16 %v483, %v482
    %v502 = vpack.c.b16 %v485, %v484
    %v503 = vpack.c.b16 %v487, %v486
    %520 = vmatpush.bf16.msra.mxu0 %v495
    %521 = vmatpush.bf16.msra.mxu0 %v494
    %522 = vmatpush.bf16.msra.mxu0 %v493
    %523 = vmatpush.bf16.msra.mxu0 %v492
    %524 = vmatpush.bf16.msra.mxu0 %v491
    %525 = vmatpush.bf16.msra.mxu0 %v490
    %526 = vmatpush.bf16.msra.mxu0 %v489
    %527 = vmatpush.bf16.msra.mxu0 %v488
    %528 = vmatmul.bf16.gmra.mxu0 %v386
    %v529 = vpop.f32.mrf.mxu0
    %v530 = vadd.f32 %v422, %v529
    %v531 = vpop.f32.mrf.mxu0
    %532 = vdwg.mxu0
    %533 = vmatpush.bf16.msra.mxu0 %v503
    %534 = vmatpush.bf16.msra.mxu0 %v502
    %535 = vmatpush.bf16.msra.mxu0 %v501
    %536 = vmatpush.bf16.msra.mxu0 %v500
    %537 = vmatpush.bf16.msra.mxu0 %v499
    %538 = vmatpush.bf16.msra.mxu0 %v498
    %539 = vmatpush.bf16.msra.mxu0 %v497
    %540 = vmatpush.bf16.msra.mxu0 %v496
    %541 = vmatmul.bf16.gmra.mxu0 %v387
    %v542 = vpop.f32.mrf.mxu0
    %v543 = vadd.f32 %v530, %v542
    %v544 = vpop.f32.mrf.mxu0
    %545 = vdwg.mxu0
    %vm546 = vcmask 7168
    %547 = vst.msk [vmem:[%s7] sm:$0xff] %vm546, %v543
    // Predicated region
    $region38: #{forward_prepped.1} parent=1 // pred_check
      _
    $region39: #{forward_prepped.1} parent=1 // pred_check_branch
      %549 = sbr.rel (0) target = $region41
    $region40: #{forward_prepped.1} parent=1 // pred_region
      _
    $region41: #{forward_prepped.1} parent=1 // pred_fallthru
      _
    // Predicated region
    $region42: #{forward_prepped.1} parent=1 // pred_check
      _
    $region43: #{forward_prepped.1} parent=1 // pred_check_branch
      %551 = sbr.rel (0) target = $region45
    $region44: #{forward_prepped.1} parent=1 // pred_region
      _
    $region45: #{forward_prepped.1} parent=1 // pred_fallthru
      _
    %552 = vsyncpa [#allocation3], 1
    %553 = vsyncpa [#allocation5], 1

</llo_original>
